<compile_context>
chip_gen: v6e
topology: v6e:2x2x1
jax: 0.10.0
libtpu: 0.0.40
codegen_flags: <defaults>
</compile_context>

<pallas_src>
import jax
import jax.numpy as jnp
from jax import lax
from jax.experimental import pallas as pl
from jax.experimental.pallas import tpu as pltpu

_LANE = 128
# ~2 MiB of f32 per input block buffer (tile_rows * padded_lanes * 4 B).
_TARGET_TILE_ELEMS = 4096 * _LANE
_VMEM_LIMIT_BYTES = 32 * 1024 * 1024
# Labels in this module are hard 0/1 -> single-log BCE is exact.
_HARD_LABELS = True


def _cdiv(a, b):
    return -(-a // b)


def _round_up(x, m):
    return ((x + m - 1) // m) * m


def _make_bce_kernel(rows, tile_r, cols, num_tiles):
    """Kernel: accumulate sum of clamped-log BCE over row-tiles of (rows, cols)."""
    needs_mask = (rows % tile_r) != 0

    def kernel(p_ref, y_ref, o_ref, acc_ref):
        i = pl.program_id(0)

        @pl.when(i == 0)
        def _init():
            acc_ref[...] = jnp.zeros_like(acc_ref)

        p = p_ref[...].astype(jnp.float32)          # (tile_r, cols)
        y = y_ref[...].astype(jnp.float32)          # (tile_r, cols)

        if _HARD_LABELS:
            # One EUP log per element; PyTorch's -100 clamp retained.
            t = jnp.where(y != 0.0, p, 1.0 - p)
            elem = -jnp.maximum(jnp.log(t), -100.0)
        else:
            # General (soft-label) BCE: -(y*log p + (1-y)*log(1-p)), clamped.
            log_p = jnp.maximum(jnp.log(p), -100.0)
            log_1mp = jnp.maximum(jnp.log1p(-p), -100.0)
            elem = -(y * log_p + (1.0 - y) * log_1mp)

        if needs_mask:
            # Zero out the Pallas-padded tail rows of the last (partial) block.
            row_ids = lax.broadcasted_iota(jnp.int32, (tile_r, cols), 0)
            valid = (i * tile_r + row_ids) < rows
            elem = jnp.where(valid, elem, 0.0)

        # Sublane-only reduce per tile; accumulate in VMEM scratch.
        acc_ref[...] += jnp.sum(elem, axis=0, keepdims=True)

        @pl.when(i == num_tiles - 1)
        def _finalize():
            o_ref[...] = acc_ref[...]

    return kernel


def _bce_sum(pred, label):
    """BCE(reduction='sum') for one (pred, label) pair via a single pallas_call."""
    cols = pred.shape[-1]
    p2d = pred.reshape(-1, cols)      # collapse leading dims; no pad, no cast
    y2d = label.reshape(-1, cols)
    rows = p2d.shape[0]

    lane_cols = _round_up(cols, _LANE)                    # VMEM lane footprint
    cap = max(8, (_TARGET_TILE_ELEMS // lane_cols) // 8 * 8)
    tile_r = min(cap, _round_up(rows, 8))
    num_tiles = _cdiv(rows, tile_r)

    kernel = _make_bce_kernel(rows, tile_r, cols, num_tiles)

    out = pl.pallas_call(
        kernel,
        out_shape=jax.ShapeDtypeStruct((1, cols), jnp.float32),
        grid_spec=pltpu.PrefetchScalarGridSpec(
            num_scalar_prefetch=0,
            grid=(num_tiles,),
            in_specs=[
                pl.BlockSpec((tile_r, cols), lambda i: (i, 0)),
                pl.BlockSpec((tile_r, cols), lambda i: (i, 0)),
            ],
            out_specs=pl.BlockSpec((1, cols), lambda i: (0, 0)),
            scratch_shapes=[pltpu.VMEM((1, cols), jnp.float32)],
        ),
        compiler_params=pltpu.CompilerParams(
            dimension_semantics=("arbitrary",),
            vmem_limit_bytes=_VMEM_LIMIT_BYTES,
        ),
    )(p2d, y2d)
    return jnp.sum(out)


@jax.jit
def loss_forward(ner_pred, ner_label, re_pred_head, re_pred_tail,
                 re_label_head, re_label_tail):
    seq_len = ner_pred.shape[1]
    total = (_bce_sum(ner_pred, ner_label)
             + _bce_sum(re_pred_head, re_label_head)
             + _bce_sum(re_pred_tail, re_label_tail))
    return total / seq_len


if __name__ == "__main__":
    key = jax.random.PRNGKey(0)
    k1, k2, k3, k4, k5, k6 = jax.random.split(key, 6)

    B, S, T, R = 2, 8, 4, 3  # batch, seq_len, ner tag size, relation count

    ner_pred = jax.nn.sigmoid(jax.random.normal(k1, (B, S, T)))
    ner_label = jax.random.bernoulli(k2, 0.5, (B, S, T)).astype(jnp.float32)

    re_pred_head = jax.nn.sigmoid(jax.random.normal(k3, (B, S, S, R)))
    re_label_head = jax.random.bernoulli(k4, 0.5, (B, S, S, R)).astype(jnp.float32)

    re_pred_tail = jax.nn.sigmoid(jax.random.normal(k5, (B, S, S, R)))
    re_label_tail = jax.random.bernoulli(k6, 0.5, (B, S, S, R)).astype(jnp.float32)

    out = loss_forward(ner_pred, ner_label, re_pred_head, re_pred_tail,
                       re_label_head, re_label_tail)
    jax.block_until_ready(out)

    # Pure-JAX reference (same clamped-log BCE semantics as PyTorch BCELoss).
    def _ref_bce_sum(p, y):
        lp = jnp.maximum(jnp.log(p), -100.0)
        l1p = jnp.maximum(jnp.log1p(-p), -100.0)
        return jnp.sum(-(y * lp + (1.0 - y) * l1p))

    ref = (_ref_bce_sum(ner_pred, ner_label)
           + _ref_bce_sum(re_pred_head, re_label_head)
           + _ref_bce_sum(re_pred_tail, re_label_tail)) / S
    assert jnp.allclose(out, ref, rtol=1e-4, atol=1e-4), (out, ref)

    print("KERNEL_OK")
</pallas_src>

<mosaic_0001>
module attributes {stable_mosaic.version = 11 : i64} {
  func.func @kernel(%arg0: i32, %arg1: memref<128x3xf32, #tpu.memory_space<vmem>>, %arg2: memref<128x3xf32, #tpu.memory_space<vmem>>, %arg3: memref<1x3xf32, #tpu.memory_space<vmem>>, %arg4: memref<1x3xf32, #tpu.memory_space<vmem>>) attributes {dimension_semantics = [#tpu.dimension_semantics<arbitrary>], iteration_bounds = array<i64: 1>, scalar_prefetch = 0 : i64, scratch_operands = 1 : i64, tpu.core_type = #tpu.core_type<tc>, window_params = [{transform_indices = @transform_0, window_bounds = array<i64: 128, 3>}, {transform_indices = @transform_1, window_bounds = array<i64: 128, 3>}, {pipeline_mode = #tpu.pipeline_mode<synchronous>, transform_indices = @transform_2, window_bounds = array<i64: 1, 3>}]} {
    %c0_i32 = arith.constant 0 : i32
    %0 = arith.cmpi eq, %arg0, %c0_i32 : i32
    %1 = arith.extui %0 : i1 to i32
    %c0_i32_0 = arith.constant 0 : i32
    %2 = arith.cmpi ne, %1, %c0_i32_0 : i32
    scf.if %2 {
      %cst_14 = arith.constant 0.000000e+00 : f32
      %23 = vector.broadcast %cst_14 : f32 to vector<1x3xf32>
      %c0_15 = arith.constant 0 : index
      %c0_16 = arith.constant 0 : index
      %24 = vector.load %arg4[%c0_15, %c0_16] : memref<1x3xf32, #tpu.memory_space<vmem>>, vector<1x3xf32>
      tpu.vector_store %arg4[%c0_15, %c0_16], %23 {strides = array<i32>} : memref<1x3xf32, #tpu.memory_space<vmem>>, vector<1x3xf32>,
    } else {
    }
    %c0 = arith.constant 0 : index
    %c0_1 = arith.constant 0 : index
    %3 = vector.load %arg1[%c0, %c0_1] : memref<128x3xf32, #tpu.memory_space<vmem>>, vector<128x3xf32>
    %c0_2 = arith.constant 0 : index
    %c0_3 = arith.constant 0 : index
    %4 = vector.load %arg2[%c0_2, %c0_3] : memref<128x3xf32, #tpu.memory_space<vmem>>, vector<128x3xf32>
    %cst = arith.constant 0.000000e+00 : f32
    %5 = vector.broadcast %cst : f32 to vector<128x3xf32>
    %6 = arith.cmpf one, %4, %5 : vector<128x3xf32>
    %cst_4 = arith.constant 1.000000e+00 : f32
    %7 = vector.broadcast %cst_4 : f32 to vector<128x3xf32>
    %8 = arith.subf %7, %3 : vector<128x3xf32>
    %9 = arith.select %6, %3, %8 : vector<128x3xi1>, vector<128x3xf32>
    %10 = math.log %9 : vector<128x3xf32>
    %cst_5 = arith.constant -1.000000e+02 : f32
    %11 = vector.broadcast %cst_5 : f32 to vector<128x3xf32>
    %12 = arith.maximumf %10, %11 : vector<128x3xf32>
    %cst_6 = arith.constant 0.000000e+00 : f32
    %13 = vector.broadcast %cst_6 : f32 to vector<128x3xf32>
    %14 = arith.subf %13, %12 : vector<128x3xf32>
    %c0_7 = arith.constant 0 : index
    %c0_8 = arith.constant 0 : index
    %15 = vector.load %arg4[%c0_7, %c0_8] : memref<1x3xf32, #tpu.memory_space<vmem>>, vector<1x3xf32>
    %cst_9 = arith.constant dense<0.000000e+00> : vector<3xf32>
    %16 = vector.multi_reduction <add>, %14, %cst_9 [0] : vector<128x3xf32> to vector<3xf32>
    %17 = vector.shape_cast %16 : vector<3xf32> to vector<1x3xf32>
    %18 = arith.addf %15, %17 : vector<1x3xf32>
    %c0_10 = arith.constant 0 : index
    %c0_11 = arith.constant 0 : index
    %19 = vector.load %arg4[%c0_10, %c0_11] : memref<1x3xf32, #tpu.memory_space<vmem>>, vector<1x3xf32>
    tpu.vector_store %arg4[%c0_10, %c0_11], %18 {strides = array<i32>} : memref<1x3xf32, #tpu.memory_space<vmem>>, vector<1x3xf32>,
    %c0_i32_12 = arith.constant 0 : i32
    %20 = arith.cmpi eq, %arg0, %c0_i32_12 : i32
    %21 = arith.extui %20 : i1 to i32
    %c0_i32_13 = arith.constant 0 : i32
    %22 = arith.cmpi ne, %21, %c0_i32_13 : i32
    scf.if %22 {
      %c0_14 = arith.constant 0 : index
      %c0_15 = arith.constant 0 : index
      %23 = vector.load %arg4[%c0_14, %c0_15] : memref<1x3xf32, #tpu.memory_space<vmem>>, vector<1x3xf32>
      %c0_16 = arith.constant 0 : index
      %c0_17 = arith.constant 0 : index
      %24 = vector.load %arg3[%c0_16, %c0_17] : memref<1x3xf32, #tpu.memory_space<vmem>>, vector<1x3xf32>
      tpu.vector_store %arg3[%c0_16, %c0_17], %23 {strides = array<i32>} : memref<1x3xf32, #tpu.memory_space<vmem>>, vector<1x3xf32>,
    } else {
    }
    return
  }
  func.func @transform_0(%arg0: i32) -> (i32, i32) {
    %c0_i32 = arith.constant 0 : i32
    %c0_i32_0 = arith.constant 0 : i32
    return %arg0, %c0_i32 : i32, i32
  }
  func.func @transform_1(%arg0: i32) -> (i32, i32) {
    %c0_i32 = arith.constant 0 : i32
    %c0_i32_0 = arith.constant 0 : i32
    return %arg0, %c0_i32 : i32, i32
  }
  func.func @transform_2(%arg0: i32) -> (i32, i32) {
    %c0_i32 = arith.constant 0 : i32
    %c0_i32_0 = arith.constant 0 : i32
    %c0_i32_1 = arith.constant 0 : i32
    return %c0_i32, %c0_i32_0 : i32, i32
  }
}

module attributes {stable_mosaic.version = 11 : i64} {
  func.func @kernel(%arg0: i32, %arg1: memref<16x4xf32, #tpu.memory_space<vmem>>, %arg2: memref<16x4xf32, #tpu.memory_space<vmem>>, %arg3: memref<1x4xf32, #tpu.memory_space<vmem>>, %arg4: memref<1x4xf32, #tpu.memory_space<vmem>>) attributes {dimension_semantics = [#tpu.dimension_semantics<arbitrary>], iteration_bounds = array<i64: 1>, scalar_prefetch = 0 : i64, scratch_operands = 1 : i64, tpu.core_type = #tpu.core_type<tc>, window_params = [{transform_indices = @transform_0, window_bounds = array<i64: 16, 4>}, {transform_indices = @transform_1, window_bounds = array<i64: 16, 4>}, {pipeline_mode = #tpu.pipeline_mode<synchronous>, transform_indices = @transform_2, window_bounds = array<i64: 1, 4>}]} {
    %c0_i32 = arith.constant 0 : i32
    %0 = arith.cmpi eq, %arg0, %c0_i32 : i32
    %1 = arith.extui %0 : i1 to i32
    %c0_i32_0 = arith.constant 0 : i32
    %2 = arith.cmpi ne, %1, %c0_i32_0 : i32
    scf.if %2 {
      %cst_14 = arith.constant 0.000000e+00 : f32
      %23 = vector.broadcast %cst_14 : f32 to vector<1x4xf32>
      %c0_15 = arith.constant 0 : index
      %c0_16 = arith.constant 0 : index
      %24 = vector.load %arg4[%c0_15, %c0_16] : memref<1x4xf32, #tpu.memory_space<vmem>>, vector<1x4xf32>
      tpu.vector_store %arg4[%c0_15, %c0_16], %23 {strides = array<i32>} : memref<1x4xf32, #tpu.memory_space<vmem>>, vector<1x4xf32>,
    } else {
    }
    %c0 = arith.constant 0 : index
    %c0_1 = arith.constant 0 : index
    %3 = vector.load %arg1[%c0, %c0_1] : memref<16x4xf32, #tpu.memory_space<vmem>>, vector<16x4xf32>
    %c0_2 = arith.constant 0 : index
    %c0_3 = arith.constant 0 : index
    %4 = vector.load %arg2[%c0_2, %c0_3] : memref<16x4xf32, #tpu.memory_space<vmem>>, vector<16x4xf32>
    %cst = arith.constant 0.000000e+00 : f32
    %5 = vector.broadcast %cst : f32 to vector<16x4xf32>
    %6 = arith.cmpf one, %4, %5 : vector<16x4xf32>
    %cst_4 = arith.constant 1.000000e+00 : f32
    %7 = vector.broadcast %cst_4 : f32 to vector<16x4xf32>
    %8 = arith.subf %7, %3 : vector<16x4xf32>
    %9 = arith.select %6, %3, %8 : vector<16x4xi1>, vector<16x4xf32>
    %10 = math.log %9 : vector<16x4xf32>
    %cst_5 = arith.constant -1.000000e+02 : f32
    %11 = vector.broadcast %cst_5 : f32 to vector<16x4xf32>
    %12 = arith.maximumf %10, %11 : vector<16x4xf32>
    %cst_6 = arith.constant 0.000000e+00 : f32
    %13 = vector.broadcast %cst_6 : f32 to vector<16x4xf32>
    %14 = arith.subf %13, %12 : vector<16x4xf32>
    %c0_7 = arith.constant 0 : index
    %c0_8 = arith.constant 0 : index
    %15 = vector.load %arg4[%c0_7, %c0_8] : memref<1x4xf32, #tpu.memory_space<vmem>>, vector<1x4xf32>
    %cst_9 = arith.constant dense<0.000000e+00> : vector<4xf32>
    %16 = vector.multi_reduction <add>, %14, %cst_9 [0] : vector<16x4xf32> to vector<4xf32>
    %17 = vector.shape_cast %16 : vector<4xf32> to vector<1x4xf32>
    %18 = arith.addf %15, %17 : vector<1x4xf32>
    %c0_10 = arith.constant 0 : index
    %c0_11 = arith.constant 0 : index
    %19 = vector.load %arg4[%c0_10, %c0_11] : memref<1x4xf32, #tpu.memory_space<vmem>>, vector<1x4xf32>
    tpu.vector_store %arg4[%c0_10, %c0_11], %18 {strides = array<i32>} : memref<1x4xf32, #tpu.memory_space<vmem>>, vector<1x4xf32>,
    %c0_i32_12 = arith.constant 0 : i32
    %20 = arith.cmpi eq, %arg0, %c0_i32_12 : i32
    %21 = arith.extui %20 : i1 to i32
    %c0_i32_13 = arith.constant 0 : i32
    %22 = arith.cmpi ne, %21, %c0_i32_13 : i32
    scf.if %22 {
      %c0_14 = arith.constant 0 : index
      %c0_15 = arith.constant 0 : index
      %23 = vector.load %arg4[%c0_14, %c0_15] : memref<1x4xf32, #tpu.memory_space<vmem>>, vector<1x4xf32>
      %c0_16 = arith.constant 0 : index
      %c0_17 = arith.constant 0 : index
      %24 = vector.load %arg3[%c0_16, %c0_17] : memref<1x4xf32, #tpu.memory_space<vmem>>, vector<1x4xf32>
      tpu.vector_store %arg3[%c0_16, %c0_17], %23 {strides = array<i32>} : memref<1x4xf32, #tpu.memory_space<vmem>>, vector<1x4xf32>,
    } else {
    }
    return
  }
  func.func @transform_0(%arg0: i32) -> (i32, i32) {
    %c0_i32 = arith.constant 0 : i32
    %c0_i32_0 = arith.constant 0 : i32
    return %arg0, %c0_i32 : i32, i32
  }
  func.func @transform_1(%arg0: i32) -> (i32, i32) {
    %c0_i32 = arith.constant 0 : i32
    %c0_i32_0 = arith.constant 0 : i32
    return %arg0, %c0_i32 : i32, i32
  }
  func.func @transform_2(%arg0: i32) -> (i32, i32) {
    %c0_i32 = arith.constant 0 : i32
    %c0_i32_0 = arith.constant 0 : i32
    %c0_i32_1 = arith.constant 0 : i32
    return %c0_i32, %c0_i32_0 : i32, i32
  }
}

</mosaic_0001>

<llo_original>
// kernel: loss_forward.4
$region0: #{loss_forward.4}
  #allocation0 [shape = 'u32[]', space=smem, size = 0x4, offset = 0x4, fixed_abs, tag = 'smem constant byte address 0x4 - core index']
  #allocation1 [shape = 'u32[144,128]{1,0:T(1,128)}', space=vmem, size = 0x12000, scoped, tag = 'internal scratch']
  #allocation2 [shape = 'f32[1,3]{1,0:T(1,128)}', space=vmem, size = 0x200, scoped, tag = 'scratch operand']
  %s0 = inlined_call_operand.vmem [shape: f32[128,3], index: 0, kind: input, shape index: {}]
  %s1 = inlined_call_operand.vmem [shape: f32[128,3], index: 1, kind: input, shape index: {}]
  %s2 = inlined_call_operand.vmem [shape: f32[1,3], index: 2, kind: output, shape index: {}]
  %s3 = sld [smem:[#allocation0]]
  $region26: #{loss_forward.4} parent=0
    _
  %s5 = ssub.s32 1, %s3
  %s6 = scalar_select 0, %s5, %s3
  // Predicated region
  $region2: #{loss_forward.4} parent=0 // pred_check
    _
  $region3: #{loss_forward.4} parent=0 // pred_check_branch
    %8 = sbr.rel (0) target = $region5
  $region4: #{loss_forward.4} parent=0 // pred_region
    _
  $region5: #{loss_forward.4} parent=0 // pred_fallthru
    _
  // Predicated region
  $region6: #{loss_forward.4} parent=0 // pred_check
    _
  $region7: #{loss_forward.4} parent=0 // pred_check_branch
    %10 = sbr.rel (0) target = $region9
  $region8: #{loss_forward.4} parent=0 // pred_region
    _
  $region9: #{loss_forward.4} parent=0 // pred_fallthru
    _
  %p11 = scmp.eq.s32.totalorder 0, 0
  // Predicated region
  $region10: #{loss_forward.4} parent=0 // pred_check
    %p12 = pneg %p11
  $region11: #{loss_forward.4} parent=0 // pred_check_branch
    %14 = sbr.rel (%p12) target = $region13
  $region12: #{loss_forward.4} parent=0 // pred_region
    %vm15 = vcmask 16384
    %16 = vst.msk [vmem:[#allocation2] sm:$0x1] %vm15, 0.0
  $region13: #{loss_forward.4} parent=0 // pred_fallthru
    _
  %v17 = vld [vmem:[%s0] sm:$0xff]
  %v18 = vld [vmem:[%s0 + $0x8] sm:$0xff]
  %v19 = vld [vmem:[%s0 + $0x10] sm:$0xff]
  %v20 = vld [vmem:[%s0 + $0x18] sm:$0xff]
  %v21 = vld [vmem:[%s0 + $0x20] sm:$0xff]
  %v22 = vld [vmem:[%s0 + $0x28] sm:$0xff]
  %v23 = vld [vmem:[%s0 + $0x30] sm:$0xff]
  %v24 = vld [vmem:[%s0 + $0x38] sm:$0xff]
  %v25 = vld [vmem:[%s0 + $0x40] sm:$0xff]
  %v26 = vld [vmem:[%s0 + $0x48] sm:$0xff]
  %v27 = vld [vmem:[%s0 + $0x50] sm:$0xff]
  %v28 = vld [vmem:[%s0 + $0x58] sm:$0xff]
  %v29 = vld [vmem:[%s0 + $0x60] sm:$0xff]
  %v30 = vld [vmem:[%s0 + $0x68] sm:$0xff]
  %v31 = vld [vmem:[%s0 + $0x70] sm:$0xff]
  %v32 = vld [vmem:[%s0 + $0x78] sm:$0xff]
  %v33 = vld [vmem:[%s1] sm:$0xff]
  %v34 = vld [vmem:[%s1 + $0x8] sm:$0xff]
  %v35 = vld [vmem:[%s1 + $0x10] sm:$0xff]
  %v36 = vld [vmem:[%s1 + $0x18] sm:$0xff]
  %v37 = vld [vmem:[%s1 + $0x20] sm:$0xff]
  %v38 = vld [vmem:[%s1 + $0x28] sm:$0xff]
  %v39 = vld [vmem:[%s1 + $0x30] sm:$0xff]
  %v40 = vld [vmem:[%s1 + $0x38] sm:$0xff]
  %v41 = vld [vmem:[%s1 + $0x40] sm:$0xff]
  %v42 = vld [vmem:[%s1 + $0x48] sm:$0xff]
  %v43 = vld [vmem:[%s1 + $0x50] sm:$0xff]
  %v44 = vld [vmem:[%s1 + $0x58] sm:$0xff]
  %v45 = vld [vmem:[%s1 + $0x60] sm:$0xff]
  %v46 = vld [vmem:[%s1 + $0x68] sm:$0xff]
  %v47 = vld [vmem:[%s1 + $0x70] sm:$0xff]
  %v48 = vld [vmem:[%s1 + $0x78] sm:$0xff]
  %vm49 = vcmp.ne.f32.partialorder %v33, 0.0
  %vm50 = vcmp.ne.f32.partialorder %v34, 0.0
  %vm51 = vcmp.ne.f32.partialorder %v35, 0.0
  %vm52 = vcmp.ne.f32.partialorder %v36, 0.0
  %vm53 = vcmp.ne.f32.partialorder %v37, 0.0
  %vm54 = vcmp.ne.f32.partialorder %v38, 0.0
  %vm55 = vcmp.ne.f32.partialorder %v39, 0.0
  %vm56 = vcmp.ne.f32.partialorder %v40, 0.0
  %vm57 = vcmp.ne.f32.partialorder %v41, 0.0
  %vm58 = vcmp.ne.f32.partialorder %v42, 0.0
  %vm59 = vcmp.ne.f32.partialorder %v43, 0.0
  %vm60 = vcmp.ne.f32.partialorder %v44, 0.0
  %vm61 = vcmp.ne.f32.partialorder %v45, 0.0
  %vm62 = vcmp.ne.f32.partialorder %v46, 0.0
  %vm63 = vcmp.ne.f32.partialorder %v47, 0.0
  %vm64 = vcmp.ne.f32.partialorder %v48, 0.0
  %v65 = vsub.f32 1.0, %v17
  %v66 = vsub.f32 1.0, %v18
  %v67 = vsub.f32 1.0, %v19
  %v68 = vsub.f32 1.0, %v20
  %v69 = vsub.f32 1.0, %v21
  %v70 = vsub.f32 1.0, %v22
  %v71 = vsub.f32 1.0, %v23
  %v72 = vsub.f32 1.0, %v24
  %v73 = vsub.f32 1.0, %v25
  %v74 = vsub.f32 1.0, %v26
  %v75 = vsub.f32 1.0, %v27
  %v76 = vsub.f32 1.0, %v28
  %v77 = vsub.f32 1.0, %v29
  %v78 = vsub.f32 1.0, %v30
  %v79 = vsub.f32 1.0, %v31
  %v80 = vsub.f32 1.0, %v32
  %v81 = vsel %vm49, %v17, %v65
  %v82 = vsel %vm50, %v18, %v66
  %v83 = vsel %vm51, %v19, %v67
  %v84 = vsel %vm52, %v20, %v68
  %v85 = vsel %vm53, %v21, %v69
  %v86 = vsel %vm54, %v22, %v70
  %v87 = vsel %vm55, %v23, %v71
  %v88 = vsel %vm56, %v24, %v72
  %v89 = vsel %vm57, %v25, %v73
  %v90 = vsel %vm58, %v26, %v74
  %v91 = vsel %vm59, %v27, %v75
  %v92 = vsel %vm60, %v28, %v76
  %v93 = vsel %vm61, %v29, %v77
  %v94 = vsel %vm62, %v30, %v78
  %v95 = vsel %vm63, %v31, %v79
  %v96 = vsel %vm64, %v32, %v80
  %v97 = vlog2.pop %v81
  %v98 = vmul.f32 %v97, 0.6931472
  %v99 = vlog2.pop %v82
  %v100 = vmul.f32 %v99, 0.6931472
  %v101 = vlog2.pop %v83
  %v102 = vmul.f32 %v101, 0.6931472
  %v103 = vlog2.pop %v84
  %v104 = vmul.f32 %v103, 0.6931472
  %v105 = vlog2.pop %v85
  %v106 = vmul.f32 %v105, 0.6931472
  %v107 = vlog2.pop %v86
  %v108 = vmul.f32 %v107, 0.6931472
  %v109 = vlog2.pop %v87
  %v110 = vmul.f32 %v109, 0.6931472
  %v111 = vlog2.pop %v88
  %v112 = vmul.f32 %v111, 0.6931472
  %v113 = vlog2.pop %v89
  %v114 = vmul.f32 %v113, 0.6931472
  %v115 = vlog2.pop %v90
  %v116 = vmul.f32 %v115, 0.6931472
  %v117 = vlog2.pop %v91
  %v118 = vmul.f32 %v117, 0.6931472
  %v119 = vlog2.pop %v92
  %v120 = vmul.f32 %v119, 0.6931472
  %v121 = vlog2.pop %v93
  %v122 = vmul.f32 %v121, 0.6931472
  %v123 = vlog2.pop %v94
  %v124 = vmul.f32 %v123, 0.6931472
  %v125 = vlog2.pop %v95
  %v126 = vmul.f32 %v125, 0.6931472
  %v127 = vlog2.pop %v96
  %v128 = vmul.f32 %v127, 0.6931472
  %v129 = vmax.f32 %v98, -100.0
  %v130 = vmax.f32 %v100, -100.0
  %v131 = vmax.f32 %v102, -100.0
  %v132 = vmax.f32 %v104, -100.0
  %v133 = vmax.f32 %v106, -100.0
  %v134 = vmax.f32 %v108, -100.0
  %v135 = vmax.f32 %v110, -100.0
  %v136 = vmax.f32 %v112, -100.0
  %v137 = vmax.f32 %v114, -100.0
  %v138 = vmax.f32 %v116, -100.0
  %v139 = vmax.f32 %v118, -100.0
  %v140 = vmax.f32 %v120, -100.0
  %v141 = vmax.f32 %v122, -100.0
  %v142 = vmax.f32 %v124, -100.0
  %v143 = vmax.f32 %v126, -100.0
  %v144 = vmax.f32 %v128, -100.0
  %v145 = vsub.f32 0.0, %v129
  %v146 = vsub.f32 0.0, %v130
  %v147 = vsub.f32 0.0, %v131
  %v148 = vsub.f32 0.0, %v132
  %v149 = vsub.f32 0.0, %v133
  %v150 = vsub.f32 0.0, %v134
  %v151 = vsub.f32 0.0, %v135
  %v152 = vsub.f32 0.0, %v136
  %v153 = vsub.f32 0.0, %v137
  %v154 = vsub.f32 0.0, %v138
  %v155 = vsub.f32 0.0, %v139
  %v156 = vsub.f32 0.0, %v140
  %v157 = vsub.f32 0.0, %v141
  %v158 = vsub.f32 0.0, %v142
  %v159 = vsub.f32 0.0, %v143
  %v160 = vsub.f32 0.0, %v144
  %v161 = vld [vmem:[#allocation2] sm:$0x1]
  %vm162 = vcmask 23552
  %v163 = vsel %vm162, %v145, 0.0
  %v164 = vsel %vm162, %v146, 0.0
  %v165 = vadd.f32 %v163, %v164
  %v166 = vsel %vm162, %v147, 0.0
  %v167 = vadd.f32 %v165, %v166
  %v168 = vsel %vm162, %v148, 0.0
  %v169 = vadd.f32 %v167, %v168
  %v170 = vsel %vm162, %v149, 0.0
  %v171 = vadd.f32 %v169, %v170
  %v172 = vsel %vm162, %v150, 0.0
  %v173 = vadd.f32 %v171, %v172
  %v174 = vsel %vm162, %v151, 0.0
  %v175 = vadd.f32 %v173, %v174
  %v176 = vsel %vm162, %v152, 0.0
  %v177 = vadd.f32 %v175, %v176
  %v178 = vsel %vm162, %v153, 0.0
  %v179 = vadd.f32 %v177, %v178
  %v180 = vsel %vm162, %v154, 0.0
  %v181 = vadd.f32 %v179, %v180
  %v182 = vsel %vm162, %v155, 0.0
  %v183 = vadd.f32 %v181, %v182
  %v184 = vsel %vm162, %v156, 0.0
  %v185 = vadd.f32 %v183, %v184
  %v186 = vsel %vm162, %v157, 0.0
  %v187 = vadd.f32 %v185, %v186
  %v188 = vsel %vm162, %v158, 0.0
  %v189 = vadd.f32 %v187, %v188
  %v190 = vsel %vm162, %v159, 0.0
  %v191 = vadd.f32 %v189, %v190
  %v192 = vsel %vm162, %v160, 0.0
  %v193 = vadd.f32 %v191, %v192
  %v194 = vrot.slane %v193, 4
  %v195 = vadd.f32 %v193, %v194
  %v196 = vrot.slane %v195, 2
  %v197 = vadd.f32 %v195, %v196
  %v198 = vrot.slane %v197, 1
  %v199 = vadd.f32 %v197, %v198
  %v200 = vadd.f32 %v161, %v199
  %vm201 = vcmask 16384
  %202 = vst.msk [vmem:[#allocation2] sm:$0x1] %vm201, %v200
  // Predicated region
  $region14: #{loss_forward.4} parent=0 // pred_check
    %p203 = pneg %p11
  $region15: #{loss_forward.4} parent=0 // pred_check_branch
    %205 = sbr.rel (%p203) target = $region17
  $region16: #{loss_forward.4} parent=0 // pred_region
    %v206 = vld [vmem:[#allocation2] sm:$0x1]
    %207 = vst.msk [vmem:[%s2] sm:$0x1] %vm201, %v206
  $region17: #{loss_forward.4} parent=0 // pred_fallthru
    _
  // Predicated region
  $region18: #{loss_forward.4} parent=0 // pred_check
    _
  $region19: #{loss_forward.4} parent=0 // pred_check_branch
    %209 = sbr.rel (0) target = $region21
  $region20: #{loss_forward.4} parent=0 // pred_region
    _
  $region21: #{loss_forward.4} parent=0 // pred_fallthru
    _
  // Predicated region
  $region22: #{loss_forward.4} parent=0 // pred_check
    _
  $region23: #{loss_forward.4} parent=0 // pred_check_branch
    %211 = sbr.rel (0) target = $region25
  $region24: #{loss_forward.4} parent=0 // pred_region
    _
  $region25: #{loss_forward.4} parent=0 // pred_fallthru
    _

// kernel: loss_forward.3
$region0: #{loss_forward.3}
  #allocation0 [shape = 'u32[]', space=smem, size = 0x4, offset = 0x4, fixed_abs, tag = 'smem constant byte address 0x4 - core index']
  #allocation1 [shape = 'u32[144,128]{1,0:T(1,128)}', space=vmem, size = 0x12000, scoped, tag = 'internal scratch']
  #allocation2 [shape = 'f32[1,4]{1,0:T(1,128)}', space=vmem, size = 0x200, scoped, tag = 'scratch operand']
  %s0 = inlined_call_operand.vmem [shape: f32[16,4], index: 0, kind: input, shape index: {}]
  %s1 = inlined_call_operand.vmem [shape: f32[16,4], index: 1, kind: input, shape index: {}]
  %s2 = inlined_call_operand.vmem [shape: f32[1,4], index: 2, kind: output, shape index: {}]
  %s3 = sld [smem:[#allocation0]]
  $region26: #{loss_forward.3} parent=0
    _
  %s5 = ssub.s32 1, %s3
  %s6 = scalar_select 0, %s5, %s3
  // Predicated region
  $region2: #{loss_forward.3} parent=0 // pred_check
    _
  $region3: #{loss_forward.3} parent=0 // pred_check_branch
    %8 = sbr.rel (0) target = $region5
  $region4: #{loss_forward.3} parent=0 // pred_region
    _
  $region5: #{loss_forward.3} parent=0 // pred_fallthru
    _
  // Predicated region
  $region6: #{loss_forward.3} parent=0 // pred_check
    _
  $region7: #{loss_forward.3} parent=0 // pred_check_branch
    %10 = sbr.rel (0) target = $region9
  $region8: #{loss_forward.3} parent=0 // pred_region
    _
  $region9: #{loss_forward.3} parent=0 // pred_fallthru
    _
  %p11 = scmp.eq.s32.totalorder 0, 0
  // Predicated region
  $region10: #{loss_forward.3} parent=0 // pred_check
    %p12 = pneg %p11
  $region11: #{loss_forward.3} parent=0 // pred_check_branch
    %14 = sbr.rel (%p12) target = $region13
  $region12: #{loss_forward.3} parent=0 // pred_region
    %vm15 = vcmask 24576
    %16 = vst.msk [vmem:[#allocation2] sm:$0x1] %vm15, 0.0
  $region13: #{loss_forward.3} parent=0 // pred_fallthru
    _
  %v17 = vld [vmem:[%s0] sm:$0xff]
  %v18 = vld [vmem:[%s0 + $0x8] sm:$0xff]
  %v19 = vld [vmem:[%s1] sm:$0xff]
  %v20 = vld [vmem:[%s1 + $0x8] sm:$0xff]
  %vm21 = vcmp.ne.f32.partialorder %v19, 0.0
  %vm22 = vcmp.ne.f32.partialorder %v20, 0.0
  %v23 = vsub.f32 1.0, %v17
  %v24 = vsub.f32 1.0, %v18
  %v25 = vsel %vm21, %v17, %v23
  %v26 = vsel %vm22, %v18, %v24
  %v27 = vlog2.pop %v25
  %v28 = vmul.f32 %v27, 0.6931472
  %v29 = vlog2.pop %v26
  %v30 = vmul.f32 %v29, 0.6931472
  %v31 = vmax.f32 %v28, -100.0
  %v32 = vmax.f32 %v30, -100.0
  %v33 = vsub.f32 0.0, %v31
  %v34 = vsub.f32 0.0, %v32
  %v35 = vld [vmem:[#allocation2] sm:$0x1]
  %vm36 = vcmask 31744
  %v37 = vsel %vm36, %v33, 0.0
  %v38 = vsel %vm36, %v34, 0.0
  %v39 = vadd.f32 %v37, %v38
  %v40 = vrot.slane %v39, 4
  %v41 = vadd.f32 %v39, %v40
  %v42 = vrot.slane %v41, 2
  %v43 = vadd.f32 %v41, %v42
  %v44 = vrot.slane %v43, 1
  %v45 = vadd.f32 %v43, %v44
  %v46 = vadd.f32 %v35, %v45
  %vm47 = vcmask 24576
  %48 = vst.msk [vmem:[#allocation2] sm:$0x1] %vm47, %v46
  // Predicated region
  $region14: #{loss_forward.3} parent=0 // pred_check
    %p49 = pneg %p11
  $region15: #{loss_forward.3} parent=0 // pred_check_branch
    %51 = sbr.rel (%p49) target = $region17
  $region16: #{loss_forward.3} parent=0 // pred_region
    %v52 = vld [vmem:[#allocation2] sm:$0x1]
    %53 = vst.msk [vmem:[%s2] sm:$0x1] %vm47, %v52
  $region17: #{loss_forward.3} parent=0 // pred_fallthru
    _
  // Predicated region
  $region18: #{loss_forward.3} parent=0 // pred_check
    _
  $region19: #{loss_forward.3} parent=0 // pred_check_branch
    %55 = sbr.rel (0) target = $region21
  $region20: #{loss_forward.3} parent=0 // pred_region
    _
  $region21: #{loss_forward.3} parent=0 // pred_fallthru
    _
  // Predicated region
  $region22: #{loss_forward.3} parent=0 // pred_check
    _
  $region23: #{loss_forward.3} parent=0 // pred_check_branch
    %57 = sbr.rel (0) target = $region25
  $region24: #{loss_forward.3} parent=0 // pred_region
    _
  $region25: #{loss_forward.3} parent=0 // pred_fallthru
    _

</llo_original>
